<compile_context>
chip_gen: v5e
topology: v5e:2x2
jax: 0.10.0
libtpu: 0.0.40
codegen_flags: <defaults>
</compile_context>

<pallas_src>
import functools
import math

import jax
import jax.numpy as jnp
from jax.experimental import pallas as pl
from jax.experimental.pallas import tpu as pltpu


_HALO = 128            # halo width (lanes); requires kernel_size <= 128
_L_TILE_CAP = 2048     # max output-tile width along L (lanes); VMEM-safe on v7x
_CO_TILE_CAP = 512     # max Cout tile
_EPILOGUE_CHUNK = 512  # lanes per dot/epilogue chunk (bounds live values)


def _round_up(x, m):
    return (x + m - 1) // m * m


def _eqlr_conv1d_kernel(x_ref, halo_ref, w_ref, b_ref, o_ref,
                        stage_ref, patches_ref, *,
                        K: int, Cin_pad: int, activation: str):
    """One grid step = (batch n, L tile l, Cout tile c);  grid = (N, n_l, n_co).

    x_ref      : (1, Cin_pad, T_out)      input L-tile (no halo), x dtype
    halo_ref   : (1, Cin_pad, 128)        the 128 input elements after the tile
    w_ref      : (TCO, K*Cin_pad)         scaled weights (k-major rows), dot dtype
    b_ref      : (TCO, 1)                 scaled bias, f32
    o_ref      : (1, TCO, T_out)          output tile
    stage_ref  : (Cin_pad, T_out+128)     contiguous [tile | halo] staging, dot dtype
    patches_ref: (K*Cin_pad, T_out)       im2col slab, dot dtype
    """
    T_out = o_ref.shape[2]

    # Build the im2col slab once per (n, l) tile; it is reused by every Cout
    # tile because the Cout grid axis is innermost and "arbitrary".
    @pl.when(pl.program_id(2) == 0)
    def _build():
        xt = x_ref[0].astype(patches_ref.dtype)              # (Cin_pad, T_out)
        patches_ref[0:Cin_pad, :] = xt
        if K > 1:
            stage_ref[:, 0:T_out] = xt
            stage_ref[:, T_out:T_out + _HALO] = halo_ref[0].astype(stage_ref.dtype)
            for k in range(1, K):
                # Full-width store; row block start k*Cin_pad is sublane-aligned.
                patches_ref[k * Cin_pad:(k + 1) * Cin_pad, :] = (
                    stage_ref[:, k:k + T_out])

    # Deep-contraction MXU matmul + f32 epilogue, chunked along lanes so the
    # live f32 result stays bounded even for large T_out.
    t0 = 0
    while t0 < T_out:
        tc = min(_EPILOGUE_CHUNK, T_out - t0)
        y = jnp.dot(w_ref[...], patches_ref[:, t0:t0 + tc],
                    preferred_element_type=jnp.float32)       # (TCO, tc) f32
        y = y + b_ref[...]
        if activation == "lrelu":
            y = jnp.where(y >= 0.0, y, 0.2 * y)
        o_ref[0, :, t0:t0 + tc] = y.astype(o_ref.dtype)
        t0 += tc


class EqLRConv1dPallas:
    """JAX/Pallas re-implementation of EqLRConv1d's forward pass."""

    def __init__(self, in_features, out_features, kernel_size, padding=0,
                 stride=1, activation="linear", lr_multiplier=1.0, bias=True,
                 bias_init=0.0, dot_dtype=jnp.bfloat16, key=None):
        assert activation in ("lrelu", "linear")
        assert 1 <= kernel_size <= _HALO, "kernel_size must be in [1, 128]"
        self.in_features = in_features
        self.out_features = out_features
        self.kernel_size = kernel_size
        self.padding = padding
        self.stride = stride
        self.activation = activation
        self.lr_multiplier = lr_multiplier
        self.dot_dtype = dot_dtype
        self.weight_gain = lr_multiplier / math.sqrt(in_features * kernel_size)
        self.bias_gain = lr_multiplier

        if key is None:
            key = jax.random.PRNGKey(0)
        # torch.randn([out, in, k]) / lr_multiplier
        self.weight = jax.random.normal(
            key, (out_features, in_features, kernel_size),
            dtype=jnp.float32) / lr_multiplier
        # torch.full([out], bias_init)
        self.bias = (jnp.full((out_features,), float(bias_init), jnp.float32)
                     if bias else None)

        # ---- hoisted (per-call-invariant) kernel parameters ----------------
        s, K, Cin, Cout = stride, kernel_size, in_features, out_features
        self._K_eff = -(-K // s)              # ceil(K/s)
        self._Cin_eff = Cin * s
        sub = 16 if jnp.dtype(dot_dtype).itemsize == 2 else 8
        self._Cin_pad = _round_up(self._Cin_eff, sub)

        w = (self.weight * self.weight_gain).astype(jnp.float32)   # (Cout,Cin,K)
        if s > 1:
            # Phase-decompose taps so a stride-s conv becomes a stride-1 conv
            # over Cin*s channels with K_eff taps:
            #   w'[co, cin*s + r, j] = w[co, cin, j*s + r]   (0 if j*s+r >= K)
            w = jnp.pad(w, ((0, 0), (0, 0), (0, self._K_eff * s - K)))
            w = w.reshape(Cout, Cin, self._K_eff, s)
            w = jnp.transpose(w, (0, 1, 3, 2)).reshape(Cout, Cin * s, self._K_eff)
        # zero-pad channels so each im2col row block is sublane aligned
        w = jnp.pad(w, ((0, 0), (0, self._Cin_pad - self._Cin_eff), (0, 0)))
        # k-major flattening: row index = k * Cin_pad + cin
        self._w_flat = jnp.transpose(w, (0, 2, 1)).reshape(
            Cout, self._K_eff * self._Cin_pad).astype(dot_dtype)

        b = (self.bias * self.bias_gain if self.bias is not None
             else jnp.zeros((Cout,), jnp.float32)).astype(jnp.float32)
        self._b2 = b.reshape(Cout, 1)

    def __call__(self, x):
        assert x.ndim == 3, f"Wrong shape: {x.shape}"
        N, Cin, L = x.shape
        assert Cin == self.in_features
        K, s, p = self.kernel_size, self.stride, self.padding
        K_eff, Cin_eff, Cin_pad = self._K_eff, self._Cin_eff, self._Cin_pad
        Cout = self.out_features

        L_pad = L + 2 * p
        L_out = (L_pad - K) // s + 1
        assert L_out >= 1, "input too short for this kernel/padding/stride"

        # ---- tiling --------------------------------------------------------
        T_out = min(_L_TILE_CAP, _round_up(L_out, 128))      # multiple of 128
        n_l = -(-L_out // T_out)
        Lx = n_l * T_out + _HALO                  # padded input length (phase units)
        t_blocks = T_out // _HALO

        if Cout <= _CO_TILE_CAP:
            tco = Cout
        elif Cout % _CO_TILE_CAP == 0:
            tco = _CO_TILE_CAP
        elif Cout % 256 == 0:
            tco = 256
        elif Cout % 128 == 0:
            tco = 128
        else:
            tco = Cout
        n_co = Cout // tco

        # ---- input prep: conv zero-padding (+ phase split for stride>1) ----
        if s == 1:
            x_eff = jnp.pad(x, ((0, 0), (0, Cin_pad - Cin), (p, Lx - L - p)))
        else:
            # x'[n, cin*s + r, u] = x_pad[n, cin, u*s + r]
            xp = jnp.pad(x, ((0, 0), (0, 0), (p, s * Lx - L - p)))
            xp = xp.reshape(N, Cin, Lx, s)
            xp = jnp.transpose(xp, (0, 1, 3, 2)).reshape(N, Cin * s, Lx)
            x_eff = jnp.pad(xp, ((0, 0), (0, Cin_pad - Cin_eff), (0, 0)))

        kernel = functools.partial(
            _eqlr_conv1d_kernel, K=K_eff, Cin_pad=Cin_pad,
            activation=self.activation)

        out_padded = pl.pallas_call(
            kernel,
            out_shape=jax.ShapeDtypeStruct((N, Cout, n_l * T_out), x.dtype),
            grid_spec=pltpu.PrefetchScalarGridSpec(
                num_scalar_prefetch=0,
                grid=(N, n_l, n_co),            # Cout innermost -> slab reuse
                in_specs=[
                    # main L tile (block index constant across c -> no re-DMA)
                    pl.BlockSpec((1, Cin_pad, T_out), lambda n, l, c: (n, 0, l)),
                    # 128-wide halo view of the same array (next T_out boundary)
                    pl.BlockSpec((1, Cin_pad, _HALO),
                                 lambda n, l, c: (n, 0, (l + 1) * t_blocks)),
                    # flattened weights (per Cout tile)
                    pl.BlockSpec((tco, K_eff * Cin_pad), lambda n, l, c: (c, 0)),
                    # bias
                    pl.BlockSpec((tco, 1), lambda n, l, c: (c, 0)),
                ],
                out_specs=pl.BlockSpec((1, tco, T_out),
                                       lambda n, l, c: (n, c, l)),
                scratch_shapes=[
                    pltpu.VMEM((Cin_pad, T_out + _HALO), self.dot_dtype),
                    pltpu.VMEM((K_eff * Cin_pad, T_out), self.dot_dtype),
                ],
            ),
            compiler_params=pltpu.CompilerParams(
                dimension_semantics=("parallel", "parallel", "arbitrary"),
                vmem_limit_bytes=48 * 1024 * 1024,
            ),
        )(x_eff, x_eff, self._w_flat, self._b2)

        return out_padded[:, :, :L_out]


def _reference_forward(layer, x):
    """Pure-JAX reference (quantizes MXU operands the same way as the kernel)."""
    cd = layer.dot_dtype
    wq = ((layer.weight * layer.weight_gain).astype(jnp.float32)
          .astype(cd).astype(jnp.float32))
    xq = x.astype(jnp.float32).astype(cd).astype(jnp.float32)
    y = jax.lax.conv_general_dilated(
        xq, wq, window_strides=(layer.stride,),
        padding=[(layer.padding, layer.padding)],
        dimension_numbers=("NCH", "OIH", "NCH"),
        precision=jax.lax.Precision.HIGHEST)
    if layer.bias is not None:
        b = (layer.bias * layer.bias_gain).astype(jnp.float32)
        y = y + b[None, :, None]
    if layer.activation == "lrelu":
        y = jnp.where(y >= 0.0, y, 0.2 * y)
    return y.astype(x.dtype)


def _check(layer, x, expect_shape):
    out = jax.block_until_ready(layer(x))
    ref = _reference_forward(layer, x)
    assert out.shape == expect_shape, (out.shape, expect_shape)
    assert ref.shape == expect_shape, (ref.shape, expect_shape)
    err = float(jnp.max(jnp.abs(out.astype(jnp.float32) - ref.astype(jnp.float32))))
    assert jnp.allclose(out, ref, atol=1e-3, rtol=1e-3), err


if __name__ == "__main__":
    key = jax.random.PRNGKey(0)
    kw1, kw2, kw3, kw4, kx1, kx2, kx3, kx4 = jax.random.split(key, 8)

    # 1) Small shapes implied by the module: x = [batch=2, channels=4, seq=16].
    layer1 = EqLRConv1dPallas(in_features=4, out_features=8, kernel_size=3,
                              padding=1, stride=1, activation="lrelu",
                              lr_multiplier=0.5, bias=True, bias_init=0.1,
                              key=kw1)
    x1 = jax.random.normal(kx1, (2, 4, 16), dtype=jnp.float32)
    _check(layer1, x1, (2, 8, 16))

    # 2) stride=2, no bias, linear activation (in-kernel strided path via
    #    phase decomposition -> only L_out columns are computed).
    layer2 = EqLRConv1dPallas(in_features=8, out_features=16, kernel_size=5,
                              padding=2, stride=2, activation="linear",
                              lr_multiplier=1.0, bias=False, key=kw2)
    x2 = jax.random.normal(kx2, (2, 8, 33), dtype=jnp.float32)
    _check(layer2, x2, (2, 16, 17))

    # 3) Wide Cout, single L tile.
    layer3 = EqLRConv1dPallas(in_features=16, out_features=512, kernel_size=3,
                              padding=1, stride=1, activation="lrelu",
                              lr_multiplier=1.0, bias=True, bias_init=0.0,
                              key=kw3)
    x3 = jax.random.normal(kx3, (2, 16, 640), dtype=jnp.float32)
    _check(layer3, x3, (2, 512, 640))

    # 4) Long sequence + Cout > tile cap: exercises L-tiling (2 tiles),
    #    Cout-tiling (2 x 512), the pl.when slab-reuse path and the chunked
    #    epilogue.
    layer4 = EqLRConv1dPallas(in_features=8, out_features=1024, kernel_size=5,
                              padding=2, stride=1, activation="lrelu",
                              lr_multiplier=1.0, bias=True, bias_init=0.05,
                              key=kw4)
    x4 = jax.random.normal(kx4, (2, 8, 3000), dtype=jnp.float32)
    _check(layer4, x4, (2, 1024, 3000))

    print("KERNEL_OK")
</pallas_src>

<mosaic_0001>
module attributes {stable_mosaic.version = 11 : i64} {
  func.func @_eqlr_conv1d_kernel(%arg0: i32, %arg1: i32, %arg2: i32, %arg3: memref<1x16x128xf32, #tpu.memory_space<vmem>>, %arg4: memref<1x16x128xf32, #tpu.memory_space<vmem>>, %arg5: memref<8x48xbf16, #tpu.memory_space<vmem>>, %arg6: memref<8x1xf32, #tpu.memory_space<vmem>>, %arg7: memref<1x8x128xf32, #tpu.memory_space<vmem>>, %arg8: memref<16x256xbf16, #tpu.memory_space<vmem>>, %arg9: memref<48x128xbf16, #tpu.memory_space<vmem>>) attributes {dimension_semantics = [#tpu.dimension_semantics<parallel>, #tpu.dimension_semantics<parallel>, #tpu.dimension_semantics<arbitrary>], iteration_bounds = array<i64: 2, 1, 1>, scalar_prefetch = 0 : i64, scratch_operands = 2 : i64, tpu.core_type = #tpu.core_type<tc>, window_params = [{transform_indices = @transform_0, window_bounds = array<i64: 1, 16, 128>}, {transform_indices = @transform_1, window_bounds = array<i64: 1, 16, 128>}, {transform_indices = @transform_2, window_bounds = array<i64: 8, 48>}, {transform_indices = @transform_3, window_bounds = array<i64: 8, 1>}, {transform_indices = @transform_4, window_bounds = array<i64: 1, 8, 128>}]} {
    %c0_i32 = arith.constant 0 : i32
    %0 = arith.cmpi eq, %arg2, %c0_i32 : i32
    %1 = arith.extui %0 : i1 to i32
    %c0_i32_0 = arith.constant 0 : i32
    %2 = arith.cmpi ne, %1, %c0_i32_0 : i32
    scf.if %2 {
      %c0_11 = arith.constant 0 : index
      %c0_12 = arith.constant 0 : index
      %c0_13 = arith.constant 0 : index
      %17 = vector.load %arg3[%c0_11, %c0_12, %c0_13] : memref<1x16x128xf32, #tpu.memory_space<vmem>>, vector<1x16x128xf32>
      %18 = vector.shape_cast %17 : vector<1x16x128xf32> to vector<16x128xf32>
      %19 = arith.truncf %18 : vector<16x128xf32> to vector<16x128xbf16>
      %c0_14 = arith.constant 0 : index
      %c0_15 = arith.constant 0 : index
      %20 = vector.load %arg9[%c0_14, %c0_15] : memref<48x128xbf16, #tpu.memory_space<vmem>>, vector<16x128xbf16>
      tpu.vector_store %arg9[%c0_14, %c0_15], %19 {strides = array<i32>} : memref<48x128xbf16, #tpu.memory_space<vmem>>, vector<16x128xbf16>,
      %c0_16 = arith.constant 0 : index
      %c0_17 = arith.constant 0 : index
      %21 = vector.load %arg8[%c0_16, %c0_17] : memref<16x256xbf16, #tpu.memory_space<vmem>>, vector<16x128xbf16>
      tpu.vector_store %arg8[%c0_16, %c0_17], %19 {strides = array<i32>} : memref<16x256xbf16, #tpu.memory_space<vmem>>, vector<16x128xbf16>,
      %c0_18 = arith.constant 0 : index
      %c0_19 = arith.constant 0 : index
      %c0_20 = arith.constant 0 : index
      %22 = vector.load %arg4[%c0_18, %c0_19, %c0_20] : memref<1x16x128xf32, #tpu.memory_space<vmem>>, vector<1x16x128xf32>
      %23 = vector.shape_cast %22 : vector<1x16x128xf32> to vector<16x128xf32>
      %24 = arith.truncf %23 : vector<16x128xf32> to vector<16x128xbf16>
      %c0_21 = arith.constant 0 : index
      %c128 = arith.constant 128 : index
      %25 = vector.load %arg8[%c0_21, %c128] : memref<16x256xbf16, #tpu.memory_space<vmem>>, vector<16x128xbf16>
      tpu.vector_store %arg8[%c0_21, %c128], %24 {strides = array<i32>} : memref<16x256xbf16, #tpu.memory_space<vmem>>, vector<16x128xbf16>,
      %c0_22 = arith.constant 0 : index
      %c1 = arith.constant 1 : index
      %26 = vector.load %arg8[%c0_22, %c1] : memref<16x256xbf16, #tpu.memory_space<vmem>>, vector<16x128xbf16>
      %c16 = arith.constant 16 : index
      %c0_23 = arith.constant 0 : index
      %27 = vector.load %arg9[%c16, %c0_23] : memref<48x128xbf16, #tpu.memory_space<vmem>>, vector<16x128xbf16>
      tpu.vector_store %arg9[%c16, %c0_23], %26 {strides = array<i32>} : memref<48x128xbf16, #tpu.memory_space<vmem>>, vector<16x128xbf16>,
      %c0_24 = arith.constant 0 : index
      %c2 = arith.constant 2 : index
      %28 = vector.load %arg8[%c0_24, %c2] : memref<16x256xbf16, #tpu.memory_space<vmem>>, vector<16x128xbf16>
      %c32 = arith.constant 32 : index
      %c0_25 = arith.constant 0 : index
      %29 = vector.load %arg9[%c32, %c0_25] : memref<48x128xbf16, #tpu.memory_space<vmem>>, vector<16x128xbf16>
      tpu.vector_store %arg9[%c32, %c0_25], %28 {strides = array<i32>} : memref<48x128xbf16, #tpu.memory_space<vmem>>, vector<16x128xbf16>,
    } else {
    }
    %c0 = arith.constant 0 : index
    %c0_1 = arith.constant 0 : index
    %3 = vector.load %arg5[%c0, %c0_1] : memref<8x48xbf16, #tpu.memory_space<vmem>>, vector<8x48xbf16>
    %c0_2 = arith.constant 0 : index
    %c0_3 = arith.constant 0 : index
    %4 = vector.load %arg9[%c0_2, %c0_3] : memref<48x128xbf16, #tpu.memory_space<vmem>>, vector<48x128xbf16>
    %cst = arith.constant dense<0.000000e+00> : vector<8x128xf32>
    %5 = tpu.matmul %3, %4, %cst {dimension_numbers = #tpu.dot_dimension_numbers<[1], [0], [0], [1], [0, 0, 1, 1], [], []>} : vector<8x48xbf16>, vector<48x128xbf16>, vector<8x128xf32> -> vector<8x128xf32>
    %c0_4 = arith.constant 0 : index
    %c0_5 = arith.constant 0 : index
    %6 = vector.load %arg6[%c0_4, %c0_5] : memref<8x1xf32, #tpu.memory_space<vmem>>, vector<8x1xf32>
    %7 = vector.broadcast %6 : vector<8x1xf32> to vector<8x128xf32>
    %8 = arith.addf %5, %7 : vector<8x128xf32>
    %cst_6 = arith.constant 0.000000e+00 : f32
    %9 = vector.broadcast %cst_6 : f32 to vector<8x128xf32>
    %10 = arith.cmpf oge, %8, %9 : vector<8x128xf32>
    %cst_7 = arith.constant 2.000000e-01 : f32
    %11 = vector.broadcast %cst_7 : f32 to vector<8x128xf32>
    %12 = arith.mulf %11, %8 : vector<8x128xf32>
    %13 = arith.select %10, %8, %12 : vector<8x128xi1>, vector<8x128xf32>
    %c0_8 = arith.constant 0 : index
    %c0_9 = arith.constant 0 : index
    %c0_10 = arith.constant 0 : index
    %14 = vector.load %arg7[%c0_8, %c0_9, %c0_10] : memref<1x8x128xf32, #tpu.memory_space<vmem>>, vector<1x8x128xf32>
    %15 = vector.shape_cast %14 : vector<1x8x128xf32> to vector<8x128xf32>
    %16 = vector.shape_cast %13 : vector<8x128xf32> to vector<1x8x128xf32>
    tpu.vector_store %arg7[%c0_8, %c0_9, %c0_10], %16 {strides = array<i32>} : memref<1x8x128xf32, #tpu.memory_space<vmem>>, vector<1x8x128xf32>,
    return
  }
  func.func @transform_0(%arg0: i32, %arg1: i32, %arg2: i32) -> (i32, i32, i32) {
    %c0_i32 = arith.constant 0 : i32
    %c0_i32_0 = arith.constant 0 : i32
    return %arg0, %c0_i32, %arg1 : i32, i32, i32
  }
  func.func @transform_1(%arg0: i32, %arg1: i32, %arg2: i32) -> (i32, i32, i32) {
    %c1_i32 = arith.constant 1 : i32
    %0 = arith.addi %arg1, %c1_i32 : i32
    %c1_i32_0 = arith.constant 1 : i32
    %1 = arith.muli %0, %c1_i32_0 : i32
    %c0_i32 = arith.constant 0 : i32
    %c0_i32_1 = arith.constant 0 : i32
    return %arg0, %c0_i32, %1 : i32, i32, i32
  }
  func.func @transform_2(%arg0: i32, %arg1: i32, %arg2: i32) -> (i32, i32) {
    %c0_i32 = arith.constant 0 : i32
    %c0_i32_0 = arith.constant 0 : i32
    return %arg2, %c0_i32 : i32, i32
  }
  func.func @transform_3(%arg0: i32, %arg1: i32, %arg2: i32) -> (i32, i32) {
    %c0_i32 = arith.constant 0 : i32
    %c0_i32_0 = arith.constant 0 : i32
    return %arg2, %c0_i32 : i32, i32
  }
  func.func @transform_4(%arg0: i32, %arg1: i32, %arg2: i32) -> (i32, i32, i32) {
    %c0_i32 = arith.constant 0 : i32
    return %arg0, %arg2, %arg1 : i32, i32, i32
  }
}

</mosaic_0001>

<llo_original>
// kernel: tpu_custom_call.1
$region0: #{tpu_custom_call.1}
  #allocation0 [shape = 'u32[]', space=smem, size = 0x4, offset = 0x4, fixed_abs, tag = 'smem constant byte address 0x4 - core index']
  #allocation1 [shape = 'u32[72,128]{1,0:T(1,128)}', space=vmem, size = 0x9000, scoped, tag = 'internal scratch']
  #allocation2 [shape = 'bf16[16,256]{1,0:T(8,128)(2,1)}', space=vmem, size = 0x2000, scoped, tag = 'scratch operand']
  #allocation3 [shape = 'bf16[48,128]{1,0:T(8,128)(2,1)}', space=vmem, size = 0x3000, scoped, tag = 'scratch operand']
  %s0 = inlined_call_operand.hbm [shape: f32[2,16,256], index: 0, kind: input, shape index: {}]
  %s1 = inlined_call_operand.hbm [shape: f32[2,16,256], index: 1, kind: input, shape index: {}]
  %s2 = inlined_call_operand.vmem [shape: bf16[8,48], index: 2, kind: input, shape index: {}]
  %s3 = inlined_call_operand.vmem [shape: f32[8,1], index: 3, kind: input, shape index: {}]
  %s4 = inlined_call_operand.hbm [shape: f32[2,8,128], index: 4, kind: output, shape index: {}]
  %s5 = sld [smem:[#allocation0]]
  $region61: #{tpu_custom_call.1} parent=0
    _
  %s7 = ssub.s32 1, %s5
  %s8 = scalar_select 0, %s7, %s5
  $region1: #{tpu_custom_call.1} parent=0
    #allocation4 [shape = 'u8[16384]{0}', space=vmem, size = 0x4000, scoped, tag = 'input window, operand 0']
    #allocation5 [shape = 's32[2]{0}', space=sflag, size = 0x8, scoped, tag = 'scoped memory for tpu_custom_call.1']
    #allocation6 [shape = 's32[2]{0}', space=sflag, size = 0x8, scoped, tag = 'scoped memory for tpu_custom_call.1']
    #allocation7 [shape = 'u8[16384]{0}', space=vmem, size = 0x4000, scoped, tag = 'input window, operand 1']
    #allocation8 [shape = 's32[2]{0}', space=sflag, size = 0x8, scoped, tag = 'scoped memory for tpu_custom_call.1']
    #allocation9 [shape = 'u8[8192]{0}', space=vmem, size = 0x2000, scoped, tag = 'output window, operand 0']
    %9 = vsyncpa [#allocation5], 0
    %s10 = scalar_lea.sflag [#allocation5], 1
    %11 = vsyncpa %s10, 0
    %12 = vsyncpa [#allocation8], 0
    %s13 = scalar_lea.sflag [#allocation8], 1
    %14 = vsyncpa %s13, 0
    %15 = vsyncpa [#allocation6], 0
    %s16 = scalar_lea.sflag [#allocation6], 1
    %17 = vsyncpa %s16, 0
    loop: start=0, step=1, limit=4
    $region2: #{tpu_custom_call.1} parent=1 // loop_pre_header
      _
    $region3: #{tpu_custom_call.1} parent=1 // loop_header
      %s19 = sphi 0, %s23
      %p20 = scmp.ge.s32.totalorder %s19, 4
      %s26 = sphi 0, %s45
      %s27 = sphi 0, %s41
      %s28 = sphi 0, %s37
      %s29 = sphi 0, %s26
      %s30 = sphi 0, %s27
      %s31 = sphi 0, %s28
      %s32 = sphi 0, %s29
      %s33 = sphi 0, %s30
      %s34 = sphi 0, %s31
      %s50 = sphi 0, %s52
      %s53 = sphi 0, %s50
      %s54 = sphi 0, %s53
      %s70 = sphi 0, %s54
      %s80 = sphi 0, %s82
      %s83 = sphi 0, %s80
      %s84 = sphi 0, %s83
      %s100 = sphi 0, %s84
      %s106 = sphi 0, %s108
      %s109 = sphi 0, %s106
      %s110 = sphi 0, %s109
      %s126 = sphi 0, %s110
      %s132 = sphi 0, %s134
      %s135 = sphi 0, %s132
      %s136 = sphi 0, %s135
      %s152 = sphi 0, %s136
      %s162 = sphi 0, %s164
      %s165 = sphi 0, %s162
      %s166 = sphi 0, %s165
      %s182 = sphi 0, %s166
    $region4: #{tpu_custom_call.1} parent=1 // loop_header_branch
      %22 = sbr.rel (%p20) target = $region8
    $region5: #{tpu_custom_call.1} parent=1 // loop_body
      %s24 = ssub.s32 %s19, 1
      %s25 = ssub.s32 %s19, 2
      %s35 = sadd.s32 1, %s28
      %p36 = scmp.ge.s32.totalorder %s35, 1
      %s37 = scalar_select %p36, 0, %s35
      %s38 = sadd.s32 1, %s27
      %s39 = scalar_select %p36, %s38, %s27
      %p40 = scmp.ge.s32.totalorder %s39, 1
      %s41 = scalar_select %p40, 0, %s39
      %s42 = sadd.s32 1, %s26
      %s43 = scalar_select %p40, %s42, %s26
      %p44 = scmp.ge.s32.totalorder %s43, 2
      %s45 = scalar_select %p44, 0, %s43
      %s46 = ssub.s32 %s26, %s45
      %s47 = ssub.s32 %s27, %s41
      %s48 = sor.u32 %s46, %s47
      %p49 = scmp.eq.s32.totalorder %s48, 0
      %s51 = sadd.s32 %s50, 1
      %s52 = scalar_select %p49, %s50, %s51
      %p55 = pneg %p49
      %p56 = scmp.eq.s32.totalorder %s19, 1
      %p57 = por %p55, %p56
      %p58 = scmp.ne.s32.totalorder %s50, %s53
      %p59 = scmp.eq.s32.totalorder %s19, 0
      %p60 = por %p58, %p59
      %p61 = scmp.ne.s32.totalorder %s50, %s53
      %p62 = scmp.eq.s32.totalorder %s24, 1
      %p63 = por %p61, %p62
      %p64 = scmp.ne.s32.totalorder %s53, %s54
      %p65 = scmp.eq.s32.totalorder %s24, 0
      %p66 = por %p64, %p65
      %p67 = scmp.ne.s32.totalorder %s53, %s54
      %p68 = scmp.eq.s32.totalorder %s25, 1
      %p69 = por %p67, %p68
      %p71 = scmp.ne.s32.totalorder %s54, %s70
      %p72 = scmp.eq.s32.totalorder %s25, 0
      %p73 = por %p71, %p72
      %s74 = sadd.s32 %s27, 1
      %s75 = sadd.s32 %s41, 1
      %s76 = ssub.s32 %s26, %s45
      %s77 = ssub.s32 %s74, %s75
      %s78 = sor.u32 %s76, %s77
      %p79 = scmp.eq.s32.totalorder %s78, 0
      %s81 = sadd.s32 %s80, 1
      %s82 = scalar_select %p79, %s80, %s81
      %p85 = pneg %p79
      %p86 = scmp.eq.s32.totalorder %s19, 1
      %p87 = por %p85, %p86
      %p88 = scmp.ne.s32.totalorder %s80, %s83
      %p89 = scmp.eq.s32.totalorder %s19, 0
      %p90 = por %p88, %p89
      %p91 = scmp.ne.s32.totalorder %s80, %s83
      %p92 = scmp.eq.s32.totalorder %s24, 1
      %p93 = por %p91, %p92
      %p94 = scmp.ne.s32.totalorder %s83, %s84
      %p95 = scmp.eq.s32.totalorder %s24, 0
      %p96 = por %p94, %p95
      %p97 = scmp.ne.s32.totalorder %s83, %s84
      %p98 = scmp.eq.s32.totalorder %s25, 1
      %p99 = por %p97, %p98
      %p101 = scmp.ne.s32.totalorder %s84, %s100
      %p102 = scmp.eq.s32.totalorder %s25, 0
      %p103 = por %p101, %p102
      %s104 = ssub.s32 %s28, %s37
      %p105 = scmp.eq.s32.totalorder %s104, 0
      %s107 = sadd.s32 %s106, 1
      %s108 = scalar_select %p105, %s106, %s107
      %p111 = pneg %p105
      %p112 = scmp.eq.s32.totalorder %s19, 1
      %p113 = por %p111, %p112
      %p114 = scmp.ne.s32.totalorder %s106, %s109
      %p115 = scmp.eq.s32.totalorder %s19, 0
      %p116 = por %p114, %p115
      %p117 = scmp.ne.s32.totalorder %s106, %s109
      %p118 = scmp.eq.s32.totalorder %s24, 1
      %p119 = por %p117, %p118
      %p120 = scmp.ne.s32.totalorder %s109, %s110
      %p121 = scmp.eq.s32.totalorder %s24, 0
      %p122 = por %p120, %p121
      %p123 = scmp.ne.s32.totalorder %s109, %s110
      %p124 = scmp.eq.s32.totalorder %s25, 1
      %p125 = por %p123, %p124
      %p127 = scmp.ne.s32.totalorder %s110, %s126
      %p128 = scmp.eq.s32.totalorder %s25, 0
      %p129 = por %p127, %p128
      %s130 = ssub.s32 %s28, %s37
      %p131 = scmp.eq.s32.totalorder %s130, 0
      %s133 = sadd.s32 %s132, 1
      %s134 = scalar_select %p131, %s132, %s133
      %p137 = pneg %p131
      %p138 = scmp.eq.s32.totalorder %s19, 1
      %p139 = por %p137, %p138
      %p140 = scmp.ne.s32.totalorder %s132, %s135
      %p141 = scmp.eq.s32.totalorder %s19, 0
      %p142 = por %p140, %p141
      %p143 = scmp.ne.s32.totalorder %s132, %s135
      %p144 = scmp.eq.s32.totalorder %s24, 1
      %p145 = por %p143, %p144
      %p146 = scmp.ne.s32.totalorder %s135, %s136
      %p147 = scmp.eq.s32.totalorder %s24, 0
      %p148 = por %p146, %p147
      %p149 = scmp.ne.s32.totalorder %s135, %s136
      %p150 = scmp.eq.s32.totalorder %s25, 1
      %p151 = por %p149, %p150
      %p153 = scmp.ne.s32.totalorder %s136, %s152
      %p154 = scmp.eq.s32.totalorder %s25, 0
      %p155 = por %p153, %p154
      %s156 = ssub.s32 %s26, %s45
      %s157 = ssub.s32 %s28, %s37
      %s158 = sor.u32 %s156, %s157
      %s159 = ssub.s32 %s27, %s41
      %s160 = sor.u32 %s158, %s159
      %p161 = scmp.eq.s32.totalorder %s160, 0
      %s163 = sadd.s32 %s162, 1
      %s164 = scalar_select %p161, %s162, %s163
      %p167 = pneg %p161
      %p168 = scmp.eq.s32.totalorder %s19, 1
      %p169 = por %p167, %p168
      %p170 = scmp.ne.s32.totalorder %s162, %s165
      %p171 = scmp.eq.s32.totalorder %s19, 0
      %p172 = por %p170, %p171
      %p173 = scmp.ne.s32.totalorder %s162, %s165
      %p174 = scmp.eq.s32.totalorder %s24, 1
      %p175 = por %p173, %p174
      %p176 = scmp.ne.s32.totalorder %s165, %s166
      %p177 = scmp.eq.s32.totalorder %s24, 0
      %p178 = por %p176, %p177
      %p179 = scmp.ne.s32.totalorder %s165, %s166
      %p180 = scmp.eq.s32.totalorder %s25, 1
      %p181 = por %p179, %p180
      %p183 = scmp.ne.s32.totalorder %s166, %s182
      %p184 = scmp.eq.s32.totalorder %s25, 0
      %p185 = por %p183, %p184
      %p186 = scmp.le.s32.totalorder 1, %s19
      %p187 = scmp.lt.s32.totalorder %s19, 3
      %p188 = pnand %p186, %p187
      %p189 = pneg %p188
      // Predicated region
      $region9: #{tpu_custom_call.1} parent=5 // pred_check
        _
      $region10: #{tpu_custom_call.1} parent=5 // pred_check_branch
        %191 = sbr.rel (%p188) target = $region12
      $region11: #{tpu_custom_call.1} parent=5 // pred_region
        %s192 = ssub.s32 %s19, 1
        // Predicated region
        $region13: #{tpu_custom_call.1} parent=11 // pred_check
          %p193 = pneg %p122
        $region14: #{tpu_custom_call.1} parent=11 // pred_check_branch
          %195 = sbr.rel (%p193) target = $region16
        $region15: #{tpu_custom_call.1} parent=11 // pred_region
          %p196 = scmp.lt.s32.totalorder %s31, 0
          %s197 = scalar_select %p196, %s31, 0
          %s198 = smul.addr %s197, 4
          %s199 = scalar_lea.vmem %s2, %s198
        $region16: #{tpu_custom_call.1} parent=11 // pred_fallthru
          _
        // Predicated region
        $region17: #{tpu_custom_call.1} parent=11 // pred_check
          %p200 = pneg %p148
        $region18: #{tpu_custom_call.1} parent=11 // pred_check_branch
          %202 = sbr.rel (%p200) target = $region20
        $region19: #{tpu_custom_call.1} parent=11 // pred_region
          %p203 = scmp.lt.s32.totalorder %s31, 0
          %s204 = scalar_select %p203, %s31, 0
          %s205 = smul.addr %s204, 8
          %s206 = scalar_lea.vmem %s3, %s205
        $region20: #{tpu_custom_call.1} parent=11 // pred_fallthru
          _
      $region12: #{tpu_custom_call.1} parent=5 // pred_fallthru
        _
      %p207 = scmp.lt.s32.totalorder %s19, 2
      // Predicated region
      $region21: #{tpu_custom_call.1} parent=5 // pred_check
        %p208 = pneg %p207
      $region22: #{tpu_custom_call.1} parent=5 // pred_check_branch
        %210 = sbr.rel (%p208) target = $region24
      $region23: #{tpu_custom_call.1} parent=5 // pred_region
        // Predicated region
        $region25: #{tpu_custom_call.1} parent=23 // pred_check
          %p211 = pneg %p60
        $region26: #{tpu_custom_call.1} parent=23 // pred_check_branch
          %213 = sbr.rel (%p211) target = $region28
        $region27: #{tpu_custom_call.1} parent=23 // pred_region
          %s214 = sand.u32 %s50, 1
          %s215 = scalar_lea.sflag [#allocation5], %s214
          %s216 = sand.u32 %s50, 1
          %s217 = smul.addr %s216, 16
          %s218 = scalar_lea.vmem [#allocation4], %s217
          %220 = vsyncadd %s215, 0
          %s221 = smul.addr %s26, 4
          %s222 = sadd.s32 %s27, %s221
          %s223 = smul.addr %s222, 8
          %s224 = scalar_lea.hbm %s0, %s223
          %s225 = sshll.u32 %s224, 4
          %s226 = int_to_ptr.hbm [resolvable:$true] %s225
          %s227 = sshll.u32 %s218, 4
          %s228 = int_to_ptr.vmem [resolvable:$true] %s227
          %233 = dma.hbm_to_vmem [thread:$0]  %s226, 256, %s228, %s215, 256, 128, 8
        $region28: #{tpu_custom_call.1} parent=23 // pred_fallthru
          _
        // Predicated region
        $region29: #{tpu_custom_call.1} parent=23 // pred_check
          %p234 = pneg %p90
        $region30: #{tpu_custom_call.1} parent=23 // pred_check_branch
          %236 = sbr.rel (%p234) target = $region32
        $region31: #{tpu_custom_call.1} parent=23 // pred_region
          %s237 = sand.u32 %s80, 1
          %s238 = scalar_lea.sflag [#allocation8], %s237
          %s239 = sand.u32 %s80, 1
          %s240 = smul.addr %s239, 16
          %s241 = scalar_lea.vmem [#allocation7], %s240
          %s242 = sadd.s32 %s27, 1
          %244 = vsyncadd %s238, 0
          %s245 = smul.addr %s26, 4
          %s246 = sadd.s32 %s242, %s245
          %s247 = smul.addr %s246, 8
          %s248 = scalar_lea.hbm %s1, %s247
          %s249 = sshll.u32 %s248, 4
          %s250 = int_to_ptr.hbm [resolvable:$true] %s249
          %s251 = sshll.u32 %s241, 4
          %s252 = int_to_ptr.vmem [resolvable:$true] %s251
          %257 = dma.hbm_to_vmem [thread:$0]  %s250, 256, %s252, %s238, 256, 128, 8
        $region32: #{tpu_custom_call.1} parent=23 // pred_fallthru
          _
      $region24: #{tpu_custom_call.1} parent=5 // pred_fallthru
        _
      %p258 = scmp.le.s32.totalorder 1, %s19
      %p259 = scmp.lt.s32.totalorder %s19, 3
      %p260 = pnand %p258, %p259
      %p261 = pneg %p260
      // Predicated region
      $region33: #{tpu_custom_call.1} parent=5 // pred_check
        _
      $region34: #{tpu_custom_call.1} parent=5 // pred_check_branch
        %263 = sbr.rel (%p260) target = $region36
      $region35: #{tpu_custom_call.1} parent=5 // pred_region
        %s264 = ssub.s32 %s19, 1
        %s265 = sand.u32 %s53, 1
        %s266 = scalar_lea.sflag [#allocation5], %s265
        %s267 = sand.u32 %s53, 1
        %s268 = smul.addr %s267, 16
        %s269 = scalar_lea.vmem [#allocation4], %s268
        // Predicated region
        $region37: #{tpu_custom_call.1} parent=35 // pred_check
          %p270 = pneg %p66
        $region38: #{tpu_custom_call.1} parent=35 // pred_check_branch
          %272 = sbr.rel (%p270) target = $region40
        $region39: #{tpu_custom_call.1} parent=35 // pred_region
          %274 = dma.done %s266, 256
        $region40: #{tpu_custom_call.1} parent=35 // pred_fallthru
          _
        %s275 = sand.u32 %s83, 1
        %s276 = scalar_lea.sflag [#allocation8], %s275
        %s277 = sand.u32 %s83, 1
        %s278 = smul.addr %s277, 16
        %s279 = scalar_lea.vmem [#allocation7], %s278
        // Predicated region
        $region41: #{tpu_custom_call.1} parent=35 // pred_check
          %p280 = pneg %p96
        $region42: #{tpu_custom_call.1} parent=35 // pred_check_branch
          %282 = sbr.rel (%p280) target = $region44
        $region43: #{tpu_custom_call.1} parent=35 // pred_region
          %284 = dma.done %s276, 256
        $region44: #{tpu_custom_call.1} parent=35 // pred_fallthru
          _
        %s285 = sand.u32 %s53, 1
        %s286 = scalar_lea.sflag [#allocation5], %s285
        %s287 = sand.u32 %s53, 1
        %s288 = smul.addr %s287, 16
        %s289 = scalar_lea.vmem [#allocation4], %s288
        %p290 = pneg %p66
        %p291 = pneg %p63
        %s292 = sand.u32 %s83, 1
        %s293 = scalar_lea.sflag [#allocation8], %s292
        %s294 = sand.u32 %s83, 1
        %s295 = smul.addr %s294, 16
        %s296 = scalar_lea.vmem [#allocation7], %s295
        %p297 = pneg %p96
        %p298 = pneg %p93
        %p299 = scmp.lt.s32.totalorder %s31, 0
        %s300 = scalar_select %p299, %s31, 0
        %s301 = smul.addr %s300, 4
        %s302 = scalar_lea.vmem %s2, %s301
        %p303 = pneg %p122
        %p304 = pneg %p119
        %p305 = scmp.lt.s32.totalorder %s31, 0
        %s306 = scalar_select %p305, %s31, 0
        %s307 = smul.addr %s306, 8
        %s308 = scalar_lea.vmem %s3, %s307
        %p309 = pneg %p148
        %p310 = pneg %p145
        %p311 = pneg %p178
        %p312 = pneg %p175
        %s313 = sand.u32 %s165, 1
        %s314 = scalar_lea.sflag [#allocation6], %s313
        %s315 = sand.u32 %s165, 1
        %s316 = smul.addr %s315, 8
        %s317 = scalar_lea.vmem [#allocation9], %s316
        %s318 = sadd.s32 %s30, 1
        %p319 = scmp.lt.s32.totalorder %s31, 0
        %s320 = scalar_select %p319, %s31, 0
        %s321 = smul.addr %s320, 4
        %s322 = scalar_lea.vmem %s2, %s321
        %p323 = scmp.lt.s32.totalorder %s31, 0
        %s324 = scalar_select %p323, %s31, 0
        %s325 = smul.addr %s324, 8
        %s326 = scalar_lea.vmem %s3, %s325
        %p328 = scmp.eq.s32.totalorder %s31, 0
        // Predicated region
        $region45: #{tpu_custom_call.1} parent=35 // pred_check
          %p329 = pneg %p328
        $region46: #{tpu_custom_call.1} parent=35 // pred_check_branch
          %331 = sbr.rel (%p329) target = $region48
        $region47: #{tpu_custom_call.1} parent=35 // pred_region
          %v332 = vld [vmem:[%s269] sm:$0xff]
          %v333 = vld [vmem:[%s269 + $0x8] sm:$0xff]
          %v334 = vpack.c.bf16 %v332, %v332
          %v335 = vpack.c.bf16 %v333, %v333
          %336 = vst [vmem:[#allocation3] sm:$0xf] %v334
          %337 = vst [vmem:[#allocation3 + $0x4] sm:$0xf] %v335
          %338 = vst [vmem:[#allocation2] sm:$0xf] %v334
          %339 = vst [vmem:[#allocation2 + $0x8] sm:$0xf] %v335
          %v340 = vld [vmem:[%s279] sm:$0xff]
          %v341 = vld [vmem:[%s279 + $0x8] sm:$0xff]
          %v342 = vpack.c.bf16 %v340, %v340
          %v343 = vpack.c.bf16 %v341, %v341
          %344 = vst [vmem:[#allocation2 + $0x4] sm:$0xf] %v342
          %345 = vst [vmem:[#allocation2 + $0xc] sm:$0xf] %v343
          %v346 = vld [vmem:[#allocation2] sm:$0xff]
          %v347 = vld [vmem:[#allocation2 + $0x8] sm:$0xff]
          %350 = vrot.lane.b32.xlu0 %v346, 127
          %v351 = vpop.permute.xlu0 %350
          %352 = vrot.lane.b32.xlu0 %v347, 127
          %v353 = vpop.permute.xlu0 %352
          %v354 = vrot.slane %v351, 4
          %v355 = vrot.slane %v353, 4
          %vm356 = vcmask 1039360
          %v357 = vsel %vm356, %v351, %v354
          %v358 = vsel %vm356, %v353, %v355
          %361 = vst [vmem:[#allocation3 + $0x8] sm:$0xf] %v357
          %362 = vst [vmem:[#allocation3 + $0xc] sm:$0xf] %v358
          %v363 = vld [vmem:[#allocation2] sm:$0xff]
          %v364 = vld [vmem:[#allocation2 + $0x8] sm:$0xff]
          %367 = vrot.lane.b32.xlu0 %v363, 126
          %v368 = vpop.permute.xlu0 %367
          %369 = vrot.lane.b32.xlu0 %v364, 126
          %v370 = vpop.permute.xlu0 %369
          %v371 = vrot.slane %v368, 4
          %v372 = vrot.slane %v370, 4
          %vm373 = vcmask 1031168
          %v374 = vsel %vm373, %v368, %v371
          %v375 = vsel %vm373, %v370, %v372
          %378 = vst [vmem:[#allocation3 + $0x10] sm:$0xf] %v374
          %379 = vst [vmem:[#allocation3 + $0x14] sm:$0xf] %v375
        $region48: #{tpu_custom_call.1} parent=35 // pred_fallthru
          _
        %v380 = vld [vmem:[%s322] sm:$0xf]
        %v381 = vld [vmem:[#allocation3] sm:$0xf]
        %v382 = vld [vmem:[#allocation3 + $0x4] sm:$0xf]
        %v383 = vld [vmem:[#allocation3 + $0x8] sm:$0xf]
        %v384 = vld [vmem:[#allocation3 + $0xc] sm:$0xf]
        %v385 = vld [vmem:[#allocation3 + $0x10] sm:$0xf]
        %v386 = vld [vmem:[#allocation3 + $0x14] sm:$0xf]
        %v387 = vld [vmem:[%s326] sm:$0xff]
        %389 = vset.pattern.permute.xlu0 0
        %390 = vperm.xlu0 %389, %v387
        %v391 = vpop.permute.xlu0 %390
        %v399 = vunpack.c.l.b16 %v381
        %v400 = vunpack.c.l.b16 %v382
        %v401 = vunpack.c.l.b16 %v383
        %v402 = vunpack.c.l.b16 %v384
        %v403 = vunpack.c.l.b16 %v385
        %v404 = vunpack.c.l.b16 %v386
        %v405 = vpack.c.b16 %v400, %v399
        %v406 = vpack.c.b16 %v402, %v401
        %v407 = vpack.c.b16 %v404, %v403
        %vm411 = vcmask 392192
        %v413 = vsel %vm411, %v380, 0
        %415 = vmatpush.bf16.msra.mxu0 0
        %416 = vmatpush.bf16.msra.mxu0 0
        %417 = vmatpush.bf16.msra.mxu0 0
        %418 = vmatpush.bf16.msra.mxu0 0
        %419 = vmatpush.bf16.msra.mxu0 0
        %420 = vmatpush.bf16.msra.mxu0 %v407
        %421 = vmatpush.bf16.msra.mxu0 %v406
        %422 = vmatpush.bf16.msra.mxu0 %v405
        %423 = vmatmul.bf16.gmra.mxu0 %v413
        %v424 = vpop.f32.mrf.mxu0
        %v425 = vadd.f32 %v391, %v424
        %v426 = vpop.f32.mrf.mxu0
        %427 = vdwg.mxu0
        %vm428 = vcmp.ge.f32.partialorder %v425, 0.0
        %v429 = vmul.f32 %v425, 0.2
        %v430 = vsel %vm428, %v425, %v429
        %431 = vst [vmem:[%s317] sm:$0xff] %v430
        %s432 = sand.u32 %s165, 1
        %s433 = scalar_lea.sflag [#allocation6], %s432
        %s434 = sand.u32 %s165, 1
        %s435 = smul.addr %s434, 8
        %s436 = scalar_lea.vmem [#allocation9], %s435
        // Predicated region
        $region49: #{tpu_custom_call.1} parent=35 // pred_check
          %p437 = pneg %p175
        $region50: #{tpu_custom_call.1} parent=35 // pred_check_branch
          %439 = sbr.rel (%p437) target = $region52
        $region51: #{tpu_custom_call.1} parent=35 // pred_region
          %441 = vsyncadd %s433, 0
          %s442 = sadd.s32 %s30, %s31
          %s443 = sadd.s32 %s442, %s29
          %s444 = smul.addr %s443, 8
          %s445 = scalar_lea.hbm %s4, %s444
          %s447 = sshll.u32 %s436, 4
          %s448 = int_to_ptr.vmem [resolvable:$true] %s447
          %s449 = sshll.u32 %s445, 4
          %s450 = int_to_ptr.hbm [resolvable:$true] %s449
          %452 = dma.vmem_to_hbm [thread:$0]  %s448, 128, %s450, %s433
        $region52: #{tpu_custom_call.1} parent=35 // pred_fallthru
          _
      $region36: #{tpu_custom_call.1} parent=5 // pred_fallthru
        _
      %p453 = scmp.le.s32.totalorder 2, %s19
      // Predicated region
      $region53: #{tpu_custom_call.1} parent=5 // pred_check
        %p454 = pneg %p453
      $region54: #{tpu_custom_call.1} parent=5 // pred_check_branch
        %456 = sbr.rel (%p454) target = $region56
      $region55: #{tpu_custom_call.1} parent=5 // pred_region
        %s457 = ssub.s32 %s19, 2
        // Predicated region
        $region57: #{tpu_custom_call.1} parent=55 // pred_check
          %p458 = pneg %p181
        $region58: #{tpu_custom_call.1} parent=55 // pred_check_branch
          %460 = sbr.rel (%p458) target = $region60
        $region59: #{tpu_custom_call.1} parent=55 // pred_region
          %s461 = sand.u32 %s166, 1
          %s462 = scalar_lea.sflag [#allocation6], %s461
          %s463 = sand.u32 %s166, 1
          %s464 = smul.addr %s463, 8
          %s465 = scalar_lea.vmem [#allocation9], %s464
          %467 = dma.done %s462, 128
        $region60: #{tpu_custom_call.1} parent=55 // pred_fallthru
          _
      $region56: #{tpu_custom_call.1} parent=5 // pred_fallthru
        _
    $region6: #{tpu_custom_call.1} parent=1 // loop_footer
      %s23 = sadd.s32 1, %s19
    $region7: #{tpu_custom_call.1} parent=1 // loop_footer_branch
      %18 = sbr.rel target = $region3
    $region8: #{tpu_custom_call.1} parent=1 // loop_exit
      _
    %468 = vsyncpa [#allocation5], 1
    %s469 = scalar_lea.sflag [#allocation5], 1
    %470 = vsyncpa %s469, 1
    %471 = vsyncpa [#allocation8], 1
    %s472 = scalar_lea.sflag [#allocation8], 1
    %473 = vsyncpa %s472, 1
    %474 = vsyncpa [#allocation6], 1
    %s475 = scalar_lea.sflag [#allocation6], 1
    %476 = vsyncpa %s475, 1

</llo_original>
